<compile_context>
chip_gen: v5e
topology: v5e:2x2
jax: 0.10.0
libtpu: 0.0.40
codegen_flags: <defaults>
</compile_context>

<pallas_src>
import functools

import jax
import jax.numpy as jnp
from jax.experimental import pallas as pl
from jax.experimental.pallas import tpu as pltpu


# ----------------------------------------------------------------------------
# Goal table (same values as the PyTorch module's self.goals dict)
# ----------------------------------------------------------------------------
GOALS = {
    1:  [0, 0, 1, 1, 0, 0],
    2:  [0, 0, 1, 1, 2, 2],
    4:  [0, 0, 2, 2, 0, 0],
    5:  [0, 0, 2, 2, 1, 1],
    7:  [1, 1, 0, 0, 0, 0],
    10: [1, 1, 2, 2, 0, 0],
    13: [2, 2, 0, 0, 0, 0],
    16: [2, 2, 1, 1, 0, 0],
}

NUM_GOAL_TOKENS = 3   # vocabulary size of goal_emb
LANE = 128            # TPU lane width


def _lane_layout(hidden):
    """Static layout plan: (h_pad, pack, lane) for lane-dense output rows."""
    if hidden % LANE == 0:
        return hidden, 1, hidden
    if hidden < LANE:
        h_pad = pl.next_power_of_2(hidden)      # power of two -> divides 128
        pack = LANE // h_pad
        return h_pad, pack, LANE
    h_pad = pl.cdiv(hidden, LANE) * LANE        # hidden > 128, pad up
    return h_pad, 1, h_pad


# ----------------------------------------------------------------------------
# Pallas kernel: embedding gather via VPU select chain (lane-dense layout)
# ----------------------------------------------------------------------------
def _goal_emb_select_kernel(idx_ref, emb_ref, out_ref):
    # idx_ref: (TR, lane) int32 — each lane holds the goal id for its slot
    # emb_ref: (3, lane)  f32   — embedding rows pre-tiled to lane width
    # out_ref: (TR, lane) f32
    idx = idx_ref[...]
    e0 = emb_ref[0:1, :]
    e1 = emb_ref[1:2, :]
    e2 = emb_ref[2:3, :]
    # Goal ids are in {0, 1, 2}: two selects per output vreg on the VALU.
    out_ref[...] = jnp.where(idx == 0, e0, jnp.where(idx == 1, e1, e2))


def _goal_emb_pallas(idx_packed, emb_lane, block_rows):
    """idx_packed: (R, lane) int32; emb_lane: (3, lane) f32 -> (R, lane) f32."""
    r, lane = idx_packed.shape
    return pl.pallas_call(
        _goal_emb_select_kernel,
        out_shape=jax.ShapeDtypeStruct((r, lane), emb_lane.dtype),
        grid_spec=pltpu.PrefetchScalarGridSpec(
            num_scalar_prefetch=0,
            grid=(r // block_rows,),
            in_specs=[
                pl.BlockSpec((block_rows, lane), lambda i: (i, 0)),
                pl.BlockSpec((NUM_GOAL_TOKENS, lane), lambda i: (0, 0)),
            ],
            out_specs=pl.BlockSpec((block_rows, lane), lambda i: (i, 0)),
        ),
        compiler_params=pltpu.CompilerParams(
            dimension_semantics=("parallel",),
        ),
    )(idx_packed, emb_lane)


# ----------------------------------------------------------------------------
# Single jitted forward: table lookup -> lane packing -> kernel -> reshape
# ----------------------------------------------------------------------------
@functools.partial(jax.jit, static_argnames=("horizon", "hidden"))
def _oracle_goal_forward(rows, goal_table, emb_lane, *, horizon, hidden):
    h_pad, pack, lane = _lane_layout(hidden)

    # Per-example goal index rows (values in {0,1,2}), sliced to horizon.
    goal_idx = jnp.take(goal_table, rows, axis=0)[:, :horizon]   # (B, horizon)
    b, t = goal_idx.shape
    n = b * t

    r = pl.cdiv(n, pack)                       # packed output rows
    block_rows = r if r <= 1024 else 512       # grid only kicks in at scale
    r_pad = pl.cdiv(r, block_rows) * block_rows
    n_pad = r_pad * pack

    idx_flat = jnp.pad(goal_idx.reshape(n), (0, n_pad - n))
    # idx_packed[row, p*h_pad + h] = idx_flat[row*pack + p]  (lane-dense idx)
    idx_packed = jnp.repeat(idx_flat.reshape(r_pad, pack), h_pad, axis=1)

    out_packed = _goal_emb_pallas(idx_packed, emb_lane, block_rows)  # (r_pad, lane)
    out = out_packed.reshape(n_pad, h_pad)[:n, :hidden].reshape(b, t, hidden)
    return out


# ----------------------------------------------------------------------------
# OracleGoal module in JAX
# ----------------------------------------------------------------------------
class OracleGoalPallas:
    def __init__(self, hidden, key):
        self.hidden = hidden
        # nn.Embedding(3, hidden) default init ~ N(0, 1); deterministic here.
        self.goal_emb_weight = jax.random.normal(
            key, (NUM_GOAL_TOKENS, hidden), dtype=jnp.float32)

        # Precompute the lane-dense (3, lane) embedding table once.
        h_pad, pack, _ = _lane_layout(hidden)
        emb_pad = jnp.pad(self.goal_emb_weight, ((0, 0), (0, h_pad - hidden)))
        self.emb_lane = jnp.tile(emb_pad, (1, pack))

        self._var_ids = sorted(GOALS)
        self._var_to_row = {v: i for i, v in enumerate(self._var_ids)}
        # Precomputed device-side goal table (num_variations, 6) int32.
        self.goal_table = jnp.asarray(
            [GOALS[v] for v in self._var_ids], dtype=jnp.int32)

    def __call__(self, variation, horizon):
        # variation is a python list of ids -> row indices into goal_table.
        # (The Python dict lookup in the original module is host-side work;
        #  it is folded into a precomputed device table + host row indices.)
        rows = jnp.asarray(
            [self._var_to_row[int(v)] for v in variation], dtype=jnp.int32)
        return _oracle_goal_forward(
            rows, self.goal_table, self.emb_lane,
            horizon=int(horizon), hidden=self.hidden)


# ----------------------------------------------------------------------------
# Pure-JAX reference (no Pallas) for a correctness check
# ----------------------------------------------------------------------------
def _reference(module, variation, horizon):
    goal_indices = jnp.concatenate(
        [jnp.asarray([GOALS[v]], dtype=jnp.int32) for v in variation], axis=0)
    goal_indices = goal_indices[:, :horizon]
    return module.goal_emb_weight[goal_indices]


def _check(hidden, variation, horizon, key):
    module = OracleGoalPallas(hidden, key)
    out = jax.block_until_ready(module(variation, horizon))
    ref = _reference(module, variation, horizon)
    assert out.shape == (len(variation), horizon, hidden), out.shape
    assert jnp.allclose(out, ref, atol=1e-6, rtol=1e-6), \
        f"mismatch vs reference (hidden={hidden})"


if __name__ == "__main__":
    key = jax.random.PRNGKey(0)

    # Small canonical config: batch=2 variations, horizon=6, hidden=32
    # (pack = 4 rows per 128-lane row).
    _check(hidden=32, variation=[1, 10], horizon=6, key=key)

    # Exercise the pad-to-power-of-two path (hidden=48 -> h_pad=64, pack=2).
    _check(hidden=48, variation=[2, 5, 16], horizon=4, key=key)

    # Exercise the hidden > 128 pad path (hidden=160 -> lane=256, pack=1).
    _check(hidden=160, variation=[7], horizon=3, key=key)

    print("KERNEL_OK")
</pallas_src>

<mosaic_0001>
module attributes {stable_mosaic.version = 11 : i64} {
  func.func @_goal_emb_select_kernel(%arg0: i32, %arg1: memref<3x128xi32, #tpu.memory_space<vmem>>, %arg2: memref<3x128xf32, #tpu.memory_space<vmem>>, %arg3: memref<3x128xf32, #tpu.memory_space<vmem>>) attributes {dimension_semantics = [#tpu.dimension_semantics<parallel>], iteration_bounds = array<i64: 1>, scalar_prefetch = 0 : i64, scratch_operands = 0 : i64, tpu.core_type = #tpu.core_type<tc>, window_params = [{transform_indices = @transform_0, window_bounds = array<i64: 3, 128>}, {pipeline_mode = #tpu.pipeline_mode<synchronous>, transform_indices = @transform_1, window_bounds = array<i64: 3, 128>}, {transform_indices = @transform_2, window_bounds = array<i64: 3, 128>}]} {
    %c0 = arith.constant 0 : index
    %c0_0 = arith.constant 0 : index
    %0 = vector.load %arg1[%c0, %c0_0] : memref<3x128xi32, #tpu.memory_space<vmem>>, vector<3x128xi32>
    %c0_1 = arith.constant 0 : index
    %c0_2 = arith.constant 0 : index
    %1 = vector.load %arg2[%c0_1, %c0_2] : memref<3x128xf32, #tpu.memory_space<vmem>>, vector<1x128xf32>
    %c1 = arith.constant 1 : index
    %c0_3 = arith.constant 0 : index
    %2 = vector.load %arg2[%c1, %c0_3] : memref<3x128xf32, #tpu.memory_space<vmem>>, vector<1x128xf32>
    %c2 = arith.constant 2 : index
    %c0_4 = arith.constant 0 : index
    %3 = vector.load %arg2[%c2, %c0_4] : memref<3x128xf32, #tpu.memory_space<vmem>>, vector<1x128xf32>
    %c0_i32 = arith.constant 0 : i32
    %4 = vector.broadcast %c0_i32 : i32 to vector<3x128xi32>
    %5 = arith.cmpi eq, %0, %4 : vector<3x128xi32>
    %c1_i32 = arith.constant 1 : i32
    %6 = vector.broadcast %c1_i32 : i32 to vector<3x128xi32>
    %7 = arith.cmpi eq, %0, %6 : vector<3x128xi32>
    %8 = vector.shape_cast %2 : vector<1x128xf32> to vector<1x128xf32>
    %9 = vector.broadcast %8 : vector<1x128xf32> to vector<3x128xf32>
    %10 = vector.shape_cast %3 : vector<1x128xf32> to vector<1x128xf32>
    %11 = vector.broadcast %10 : vector<1x128xf32> to vector<3x128xf32>
    %12 = arith.select %7, %9, %11 : vector<3x128xi1>, vector<3x128xf32>
    %13 = vector.shape_cast %1 : vector<1x128xf32> to vector<1x128xf32>
    %14 = vector.broadcast %13 : vector<1x128xf32> to vector<3x128xf32>
    %15 = arith.select %5, %14, %12 : vector<3x128xi1>, vector<3x128xf32>
    %c0_5 = arith.constant 0 : index
    %c0_6 = arith.constant 0 : index
    %16 = vector.load %arg3[%c0_5, %c0_6] : memref<3x128xf32, #tpu.memory_space<vmem>>, vector<3x128xf32>
    tpu.vector_store %arg3[%c0_5, %c0_6], %15 {strides = array<i32>} : memref<3x128xf32, #tpu.memory_space<vmem>>, vector<3x128xf32>,
    return
  }
  func.func @transform_0(%arg0: i32) -> (i32, i32) {
    %c0_i32 = arith.constant 0 : i32
    %c0_i32_0 = arith.constant 0 : i32
    return %arg0, %c0_i32 : i32, i32
  }
  func.func @transform_1(%arg0: i32) -> (i32, i32) {
    %c0_i32 = arith.constant 0 : i32
    %c0_i32_0 = arith.constant 0 : i32
    %c0_i32_1 = arith.constant 0 : i32
    return %c0_i32, %c0_i32_0 : i32, i32
  }
  func.func @transform_2(%arg0: i32) -> (i32, i32) {
    %c0_i32 = arith.constant 0 : i32
    %c0_i32_0 = arith.constant 0 : i32
    return %arg0, %c0_i32 : i32, i32
  }
}

</mosaic_0001>

<llo_original>
// kernel: _oracle_goal_forward.1
$region0: #{_oracle_goal_forward.1}
  #allocation0 [shape = 'u32[]', space=smem, size = 0x4, offset = 0x4, fixed_abs, tag = 'smem constant byte address 0x4 - core index']
  #allocation1 [shape = 'u32[72,128]{1,0:T(1,128)}', space=vmem, size = 0x9000, scoped, tag = 'internal scratch']
  %s0 = inlined_call_operand.vmem [shape: s32[3,128], index: 0, kind: input, shape index: {}]
  %s1 = inlined_call_operand.vmem [shape: f32[3,128], index: 1, kind: input, shape index: {}]
  %s2 = inlined_call_operand.vmem [shape: f32[3,128], index: 2, kind: output, shape index: {}]
  %s3 = sld [smem:[#allocation0]]
  $region18: #{_oracle_goal_forward.1} parent=0
    _
  %s5 = ssub.s32 1, %s3
  %s6 = scalar_select 0, %s5, %s3
  // Predicated region
  $region2: #{_oracle_goal_forward.1} parent=0 // pred_check
    _
  $region3: #{_oracle_goal_forward.1} parent=0 // pred_check_branch
    %8 = sbr.rel (0) target = $region5
  $region4: #{_oracle_goal_forward.1} parent=0 // pred_region
    _
  $region5: #{_oracle_goal_forward.1} parent=0 // pred_fallthru
    _
  // Predicated region
  $region6: #{_oracle_goal_forward.1} parent=0 // pred_check
    _
  $region7: #{_oracle_goal_forward.1} parent=0 // pred_check_branch
    %10 = sbr.rel (0) target = $region9
  $region8: #{_oracle_goal_forward.1} parent=0 // pred_region
    _
  $region9: #{_oracle_goal_forward.1} parent=0 // pred_fallthru
    _
  %v11 = vld [vmem:[%s0] sm:$0x7]
  %v12 = vld [vmem:[%s1] sm:$0x1]
  %v13 = vld [vmem:[%s1 + $0x1] sm:$0x1]
  %v14 = vld [vmem:[%s1 + $0x2] sm:$0x1]
  %vm15 = vcmp.eq.s32.totalorder %v11, 0
  %vm16 = vcmp.eq.s32.totalorder %v11, 1
  %v17 = vperm.slane %v13, 0
  %v18 = vperm.slane %v14, 0
  %v19 = vsel %vm16, %v17, %v18
  %v20 = vperm.slane %v12, 0
  %v21 = vsel %vm15, %v20, %v19
  %22 = vst [vmem:[%s2] sm:$0x7] %v21
  // Predicated region
  $region10: #{_oracle_goal_forward.1} parent=0 // pred_check
    _
  $region11: #{_oracle_goal_forward.1} parent=0 // pred_check_branch
    %24 = sbr.rel (0) target = $region13
  $region12: #{_oracle_goal_forward.1} parent=0 // pred_region
    _
  $region13: #{_oracle_goal_forward.1} parent=0 // pred_fallthru
    _
  // Predicated region
  $region14: #{_oracle_goal_forward.1} parent=0 // pred_check
    _
  $region15: #{_oracle_goal_forward.1} parent=0 // pred_check_branch
    %26 = sbr.rel (0) target = $region17
  $region16: #{_oracle_goal_forward.1} parent=0 // pred_region
    _
  $region17: #{_oracle_goal_forward.1} parent=0 // pred_fallthru
    _

</llo_original>
